<compile_context>
chip_gen: v7x
topology: tpu7x:2x2x1
jax: 0.10.0
libtpu: 0.0.40
codegen_flags: <defaults>
</compile_context>

<pallas_src>
import functools

import jax
import jax.numpy as jnp
from jax import lax
from jax.experimental import pallas as pl
from jax.experimental.pallas import tpu as pltpu


def _supcon_kernel(q_ref, k_ref, labq_ref, labk_ref, npos_ref,
                   loss_ref, valid_ref, denom_ref, possum_ref,
                   *, inv_temp, out_scale, b_real, tk, keys_resident):
    qi = pl.program_id(0)
    ki = pl.program_id(1)
    nk = pl.num_programs(1)

    TQ = q_ref.shape[0]
    TK = tk

    # --- per-query-block init (first key step) ---
    @pl.when(ki == 0)
    def _init():
        denom_ref[...] = jnp.zeros_like(denom_ref)
        possum_ref[...] = jnp.zeros_like(possum_ref)

    # --- fetch current key tile / key labels ---
    if keys_resident:
        col0 = pl.multiple_of(ki * TK, TK)
        kb = k_ref[pl.ds(col0, TK), :]                 # slice of the resident key matrix
        labk = labk_ref[:, pl.ds(col0, TK)]            # (1, TK)
    else:
        kb = k_ref[...]                                # streamed (TK, D) tile
        labk = labk_ref[...]                           # (1, TK)

    # A @ B^T without an explicit transpose: contract last dims of both operands.
    # Inputs are pre-normalized and pre-scaled by 1/sqrt(T), so logits are already /T.
    logits = lax.dot_general(
        q_ref[...], kb,
        dimension_numbers=(((1,), (1,)), ((), ())),
        preferred_element_type=jnp.float32,
    )                                                  # (TQ, TK)
    # analytic row max (diagonal self-similarity = 1/T); constant shift cancels exactly
    logits = logits - inv_temp
    e = jnp.exp(logits)
    same = labq_ref[...] == labk                       # (TQ,1)==(1,TK) -> (TQ,TK)

    row0 = qi * TQ
    col_blk0 = ki * TK
    overlaps_diag = jnp.logical_and(row0 < col_blk0 + TK, col_blk0 < row0 + TQ)
    has_pad_cols = (col_blk0 + TK) > b_real
    needs_edge = jnp.logical_or(overlaps_diag, has_pad_cols)

    # --- edge path: blocks that touch the diagonal or contain padded columns ---
    @pl.when(needs_edge)
    def _edge():
        row_g = row0 + lax.broadcasted_iota(jnp.int32, (TQ, TK), 0)
        col_g = col_blk0 + lax.broadcasted_iota(jnp.int32, (TQ, TK), 1)
        excl = jnp.logical_or(row_g == col_g, col_g >= b_real)
        denom_ref[...] += jnp.sum(jnp.where(excl, 0.0, e), axis=1, keepdims=True)
        pos = jnp.logical_and(same, jnp.logical_not(excl))
        possum_ref[...] += jnp.sum(jnp.where(pos, logits, 0.0), axis=1, keepdims=True)

    # --- fast path: no diagonal, no padded columns -> no iotas / diag masks ---
    @pl.when(jnp.logical_not(needs_edge))
    def _fast():
        denom_ref[...] += jnp.sum(e, axis=1, keepdims=True)
        possum_ref[...] += jnp.sum(jnp.where(same, logits, 0.0), axis=1, keepdims=True)

    # --- finalize per row block at the last key step ---
    @pl.when(ki == nk - 1)
    def _finalize():
        npos = npos_ref[...]                           # precomputed in the wrapper
        has = npos > 0.0
        # sum_j log_prob[i,j]*pos[i,j] = sum(logits*pos) - log(denom)*num_pos
        row_val = possum_ref[...] - jnp.log(denom_ref[...]) * npos
        per_row = jnp.where(has, row_val / jnp.where(has, npos, 1.0), 0.0)
        loss_ref[...] = (-per_row) * out_scale         # 0 for rows without positives
        valid_ref[...] = has.astype(jnp.float32)


def supcon_loss(features, labels, *, temperature=0.1, scale_by_temperature=True):
    """features: (B, D) float (f32/bf16/f16); labels: (B,) int. Returns scalar f32 loss."""
    B, D = features.shape
    mm_dtype = (jnp.bfloat16
                if features.dtype in (jnp.bfloat16, jnp.float16)
                else jnp.float32)
    mm_bytes = jnp.dtype(mm_dtype).itemsize

    # ---- one-shot pre-pass in plain JAX (runs once, not nq times) ----
    f = features.astype(jnp.float32)
    # F.normalize(p=2, dim=1) with torch eps=1e-12: x / max(||x||, 1e-12)
    rnorm = lax.rsqrt(jnp.maximum(jnp.sum(f * f, axis=1, keepdims=True), 1e-24))
    inv_sqrt_t = 1.0 / (float(temperature) ** 0.5)
    # fold 1/sqrt(T) into BOTH operands -> matmul output is already scaled by 1/T
    feats_n = (f * (rnorm * inv_sqrt_t)).astype(mm_dtype)

    lab = labels.reshape(-1).astype(jnp.int32)
    # per-row positive count = (#rows with same label) - 1  (O(B log B), done once)
    sorted_lab = jnp.sort(lab)
    left = jnp.searchsorted(sorted_lab, lab, side='left')
    right = jnp.searchsorted(sorted_lab, lab, side='right')
    npos = (right - left - 1).astype(jnp.float32)

    # ---- pad rows to a multiple of 128 (lane/sublane friendly, no single-block fallback) ----
    B_pad = ((B + 127) // 128) * 128
    pad = B_pad - B
    if pad:
        feats_n = jnp.pad(feats_n, ((0, pad), (0, 0)))               # zero rows
        lab = jnp.pad(lab, (0, pad), constant_values=jnp.iinfo(jnp.int32).min)
        npos = jnp.pad(npos, (0, pad))                               # npos=0 -> invalid
    lab_col = lab.reshape(B_pad, 1)
    lab_row = lab.reshape(1, B_pad)
    npos_col = npos.reshape(B_pad, 1)

    # ---- tile / residency selection under a v7x-safe VMEM budget ----
    BUDGET = 24 << 20
    want_resident = (B_pad * D * mm_bytes) <= (8 << 20)

    # cap TQ at B_pad//2 so nq >= 2 and the "parallel" row axis can use both v7x TCs
    tq_cap = max(64, B_pad // 2)
    tq_opts = [c for c in (512, 256, 128, 64) if c <= tq_cap and B_pad % c == 0]
    tk_opts = [c for c in (512, 256, 128) if B_pad % c == 0]

    def _est(tq, tk, resident):
        key_rows = B_pad if resident else tk
        return (2 * key_rows * D * mm_bytes        # key buffers
                + 2 * tq * D * mm_bytes            # query block (double-buffered)
                + 6 * tq * tk * 4                  # logits / exp / masks / selects
                + 16 * tq * 4 + 8 * tk * 4         # labels, npos, accumulators, outputs
                + (1 << 20))                       # slack

    choice = None
    for resident in ([True, False] if want_resident else [False]):
        for tq in tq_opts:
            for tk in tk_opts:
                if _est(tq, tk, resident) <= BUDGET:
                    choice = (tq, tk, resident)
                    break
            if choice is not None:
                break
        if choice is not None:
            break
    if choice is None:
        choice = (tq_opts[-1], tk_opts[-1], False)
    TQ, TK, keys_resident = choice
    nq, nk = B_pad // TQ, B_pad // TK

    vmem_limit = int(min(48 << 20,
                         max(32 << 20, _est(TQ, TK, keys_resident) * 5 // 4 + (2 << 20))))

    kernel = functools.partial(
        _supcon_kernel,
        inv_temp=float(1.0 / temperature),
        out_scale=float(temperature) if scale_by_temperature else 1.0,
        b_real=int(B),
        tk=int(TK),
        keys_resident=bool(keys_resident),
    )

    if keys_resident:
        key_spec = pl.BlockSpec((B_pad, D), lambda qi, ki: (0, 0))    # DMA'd once
        labk_spec = pl.BlockSpec((1, B_pad), lambda qi, ki: (0, 0))
    else:
        key_spec = pl.BlockSpec((TK, D), lambda qi, ki: (ki, 0))      # streamed
        labk_spec = pl.BlockSpec((1, TK), lambda qi, ki: (0, ki))

    loss_rows, valid = pl.pallas_call(
        kernel,
        out_shape=(jax.ShapeDtypeStruct((B_pad, 1), jnp.float32),
                   jax.ShapeDtypeStruct((B_pad, 1), jnp.float32)),
        grid_spec=pltpu.PrefetchScalarGridSpec(
            num_scalar_prefetch=0,
            grid=(nq, nk),
            in_specs=[
                pl.BlockSpec((TQ, D), lambda qi, ki: (qi, 0)),   # query rows (normalized)
                key_spec,                                        # key rows (normalized)
                pl.BlockSpec((TQ, 1), lambda qi, ki: (qi, 0)),   # labels (column form)
                labk_spec,                                       # labels (row form)
                pl.BlockSpec((TQ, 1), lambda qi, ki: (qi, 0)),   # precomputed num positives
            ],
            out_specs=[
                pl.BlockSpec((TQ, 1), lambda qi, ki: (qi, 0)),   # per-row loss
                pl.BlockSpec((TQ, 1), lambda qi, ki: (qi, 0)),   # per-row valid flag
            ],
            scratch_shapes=[
                pltpu.VMEM((TQ, 1), jnp.float32),  # denominator accumulator
                pltpu.VMEM((TQ, 1), jnp.float32),  # sum(logits * positives) accumulator
            ],
        ),
        compiler_params=pltpu.CompilerParams(
            dimension_semantics=("parallel", "arbitrary"),
            vmem_limit_bytes=vmem_limit),
    )(feats_n, feats_n, lab_col, lab_row, npos_col)

    # Tiny O(B) finalize in plain JAX (keeps the row-block grid axis "parallel").
    # Matches torch: mean over rows with positives; NaN when no row has any positive.
    # TODO(synk): torch's data-dependent `raise ValueError('Log_prob has nan!')` has no
    # in-graph equivalent; we return the value (NaN propagates) instead of raising.
    total = jnp.sum(loss_rows)
    count = jnp.sum(valid)
    return total / count


def _supcon_ref(features, labels, temperature=0.1, scale_by_temperature=True):
    """Pure-JAX reference mirroring the PyTorch forward, for verification."""
    f = features.astype(jnp.float32)
    f = f / jnp.maximum(jnp.linalg.norm(f, axis=1, keepdims=True), 1e-12)
    B = f.shape[0]
    lab = labels.reshape(-1, 1)
    mask = (lab == lab.T).astype(jnp.float32)
    logits = (f @ f.T) / temperature
    logits = logits - jnp.max(logits, axis=1, keepdims=True)
    exp_logits = jnp.exp(logits)
    eye = jnp.eye(B, dtype=jnp.float32)
    pos = mask * (1.0 - eye)
    neg = 1.0 - mask
    npos = jnp.sum(pos, axis=1)
    denom = (jnp.sum(exp_logits * neg, axis=1, keepdims=True)
             + jnp.sum(exp_logits * pos, axis=1, keepdims=True))
    log_probs = logits - jnp.log(denom)
    row = jnp.sum(log_probs * pos, axis=1)
    valid = npos > 0
    per_row = jnp.where(valid, row / jnp.where(valid, npos, 1.0), 0.0)
    loss_rows = -per_row * (temperature if scale_by_temperature else 1.0)
    return jnp.sum(loss_rows * valid) / jnp.sum(valid.astype(jnp.float32))


if __name__ == "__main__":
    key = jax.random.PRNGKey(0)
    k_feat, k_lab, k_feat2, k_lab2 = jax.random.split(key, 4)

    # small case (pads 8 -> 128 rows; every block takes the edge path)
    B, D = 8, 32
    features = jax.random.normal(k_feat, (B, D), dtype=jnp.float32)
    labels = jax.random.randint(k_lab, (B,), 0, 3, dtype=jnp.int32)

    loss = supcon_loss(features, labels, temperature=0.1, scale_by_temperature=True)
    loss = jax.block_until_ready(loss)
    ref = _supcon_ref(features, labels, 0.1, True)
    assert jnp.isfinite(loss), "loss is not finite"
    assert jnp.allclose(loss, ref, atol=2e-4, rtol=2e-4), (loss, ref)

    # multi-block case (200 -> 256 rows: exercises fast path, accumulation over key
    # blocks, and padded-column exclusion in the last key block)
    B2, D2 = 200, 32
    features2 = jax.random.normal(k_feat2, (B2, D2), dtype=jnp.float32)
    labels2 = jax.random.randint(k_lab2, (B2,), 0, 7, dtype=jnp.int32)
    loss2 = jax.block_until_ready(
        supcon_loss(features2, labels2, temperature=0.1, scale_by_temperature=True))
    ref2 = _supcon_ref(features2, labels2, 0.1, True)
    assert jnp.isfinite(loss2), "loss2 is not finite"
    assert jnp.allclose(loss2, ref2, atol=2e-4, rtol=2e-4), (loss2, ref2)

    print("KERNEL_OK")
</pallas_src>

<mosaic_0001>
module attributes {stable_mosaic.version = 11 : i64} {
  func.func @_supcon_kernel(%arg0: i32, %arg1: i32, %arg2: memref<64x32xf32, #tpu.memory_space<vmem>>, %arg3: memref<128x32xf32, #tpu.memory_space<vmem>>, %arg4: memref<64x1xi32, #tpu.memory_space<vmem>>, %arg5: memref<1x128xi32, #tpu.memory_space<vmem>>, %arg6: memref<64x1xf32, #tpu.memory_space<vmem>>, %arg7: memref<64x1xf32, #tpu.memory_space<vmem>>, %arg8: memref<64x1xf32, #tpu.memory_space<vmem>>, %arg9: memref<64x1xf32, #tpu.memory_space<vmem>>, %arg10: memref<64x1xf32, #tpu.memory_space<vmem>>) attributes {dimension_semantics = [#tpu.dimension_semantics<parallel>, #tpu.dimension_semantics<arbitrary>], iteration_bounds = array<i64: 2, 1>, scalar_prefetch = 0 : i64, scratch_operands = 2 : i64, tpu.core_type = #tpu.core_type<tc>, window_params = [{transform_indices = @transform_0, window_bounds = array<i64: 64, 32>}, {pipeline_mode = #tpu.pipeline_mode<synchronous>, transform_indices = @transform_1, window_bounds = array<i64: 128, 32>}, {transform_indices = @transform_2, window_bounds = array<i64: 64, 1>}, {pipeline_mode = #tpu.pipeline_mode<synchronous>, transform_indices = @transform_3, window_bounds = array<i64: 1, 128>}, {transform_indices = @transform_4, window_bounds = array<i64: 64, 1>}, {transform_indices = @transform_5, window_bounds = array<i64: 64, 1>}, {transform_indices = @transform_6, window_bounds = array<i64: 64, 1>}]} {
    %c0_i32 = arith.constant 0 : i32
    %0 = arith.cmpi eq, %arg1, %c0_i32 : i32
    %1 = arith.extui %0 : i1 to i32
    %c0_i32_0 = arith.constant 0 : i32
    %2 = arith.cmpi ne, %1, %c0_i32_0 : i32
    scf.if %2 {
      %cst_15 = arith.constant 0.000000e+00 : f32
      %36 = vector.broadcast %cst_15 : f32 to vector<64x1xf32>
      %c0_16 = arith.constant 0 : index
      %c0_17 = arith.constant 0 : index
      %37 = vector.load %arg9[%c0_16, %c0_17] : memref<64x1xf32, #tpu.memory_space<vmem>>, vector<64x1xf32>
      tpu.vector_store %arg9[%c0_16, %c0_17], %36 {strides = array<i32>} : memref<64x1xf32, #tpu.memory_space<vmem>>, vector<64x1xf32>,
      %cst_18 = arith.constant 0.000000e+00 : f32
      %38 = vector.broadcast %cst_18 : f32 to vector<64x1xf32>
      %c0_19 = arith.constant 0 : index
      %c0_20 = arith.constant 0 : index
      %39 = vector.load %arg10[%c0_19, %c0_20] : memref<64x1xf32, #tpu.memory_space<vmem>>, vector<64x1xf32>
      tpu.vector_store %arg10[%c0_19, %c0_20], %38 {strides = array<i32>} : memref<64x1xf32, #tpu.memory_space<vmem>>, vector<64x1xf32>,
    } else {
    }
    %c128_i32 = arith.constant 128 : i32
    %3 = arith.muli %arg1, %c128_i32 : i32
    %4 = tpu.assume_multiple %3, 128 : i32
    %5 = arith.index_cast %4 : i32 to index
    %c0 = arith.constant 0 : index
    %6 = vector.load %arg3[%5, %c0] : memref<128x32xf32, #tpu.memory_space<vmem>>, vector<128x32xf32>
    %c0_1 = arith.constant 0 : index
    %7 = arith.index_cast %4 : i32 to index
    %8 = vector.load %arg5[%c0_1, %7] : memref<1x128xi32, #tpu.memory_space<vmem>>, vector<1x128xi32>
    %c0_2 = arith.constant 0 : index
    %c0_3 = arith.constant 0 : index
    %9 = vector.load %arg2[%c0_2, %c0_3] : memref<64x32xf32, #tpu.memory_space<vmem>>, vector<64x32xf32>
    %cst = arith.constant dense<0.000000e+00> : vector<64x128xf32>
    %10 = tpu.matmul %9, %6, %cst {dimension_numbers = #tpu.dot_dimension_numbers<[1], [1], [0], [0], [0, 0, 1, 0], [], []>} : vector<64x32xf32>, vector<128x32xf32>, vector<64x128xf32> -> vector<64x128xf32>
    %cst_4 = arith.constant 1.000000e+01 : f32
    %11 = vector.broadcast %cst_4 : f32 to vector<64x128xf32>
    %12 = arith.subf %10, %11 : vector<64x128xf32>
    %13 = math.exp %12 : vector<64x128xf32>
    %c0_5 = arith.constant 0 : index
    %c0_6 = arith.constant 0 : index
    %14 = vector.load %arg4[%c0_5, %c0_6] : memref<64x1xi32, #tpu.memory_space<vmem>>, vector<64x1xi32>
    %15 = vector.broadcast %14 : vector<64x1xi32> to vector<64x128xi32>
    %16 = vector.broadcast %8 : vector<1x128xi32> to vector<64x128xi32>
    %17 = arith.cmpi eq, %15, %16 : vector<64x128xi32>
    %c64_i32 = arith.constant 64 : i32
    %18 = arith.muli %arg0, %c64_i32 : i32
    %c128_i32_7 = arith.constant 128 : i32
    %19 = arith.muli %arg1, %c128_i32_7 : i32
    %c128_i32_8 = arith.constant 128 : i32
    %20 = arith.addi %19, %c128_i32_8 : i32
    %21 = arith.cmpi slt, %18, %20 : i32
    %c64_i32_9 = arith.constant 64 : i32
    %22 = arith.addi %18, %c64_i32_9 : i32
    %23 = arith.cmpi slt, %19, %22 : i32
    %24 = arith.andi %21, %23 : i1
    %c128_i32_10 = arith.constant 128 : i32
    %25 = arith.addi %19, %c128_i32_10 : i32
    %c8_i32 = arith.constant 8 : i32
    %26 = arith.cmpi sgt, %25, %c8_i32 : i32
    %27 = arith.ori %24, %26 : i1
    %28 = arith.extui %27 : i1 to i32
    %c0_i32_11 = arith.constant 0 : i32
    %29 = arith.cmpi ne, %28, %c0_i32_11 : i32
    scf.if %29 {
      %36 = tpu.iota {dimensions = array<i32: 0>} : vector<64x128xi32>
      %37 = vector.broadcast %18 : i32 to vector<64x128xi32>
      %38 = arith.addi %37, %36 : vector<64x128xi32>
      %39 = tpu.iota {dimensions = array<i32: 1>} : vector<64x128xi32>
      %40 = vector.broadcast %19 : i32 to vector<64x128xi32>
      %41 = arith.addi %40, %39 : vector<64x128xi32>
      %42 = arith.cmpi eq, %38, %41 : vector<64x128xi32>
      %c8_i32_15 = arith.constant 8 : i32
      %43 = vector.broadcast %c8_i32_15 : i32 to vector<64x128xi32>
      %44 = arith.cmpi sge, %41, %43 : vector<64x128xi32>
      %45 = arith.ori %42, %44 : vector<64x128xi1>
      %c0_16 = arith.constant 0 : index
      %c0_17 = arith.constant 0 : index
      %46 = vector.load %arg9[%c0_16, %c0_17] : memref<64x1xf32, #tpu.memory_space<vmem>>, vector<64x1xf32>
      %cst_18 = arith.constant 0.000000e+00 : f32
      %47 = vector.broadcast %cst_18 : f32 to vector<64x128xf32>
      %48 = arith.select %45, %47, %13 : vector<64x128xi1>, vector<64x128xf32>
      %cst_19 = arith.constant dense<0.000000e+00> : vector<64xf32>
      %49 = vector.multi_reduction <add>, %48, %cst_19 [1] : vector<64x128xf32> to vector<64xf32>
      %50 = vector.shape_cast %49 : vector<64xf32> to vector<64x1xf32>
      %51 = arith.addf %46, %50 : vector<64x1xf32>
      %c0_20 = arith.constant 0 : index
      %c0_21 = arith.constant 0 : index
      %52 = vector.load %arg9[%c0_20, %c0_21] : memref<64x1xf32, #tpu.memory_space<vmem>>, vector<64x1xf32>
      tpu.vector_store %arg9[%c0_20, %c0_21], %51 {strides = array<i32>} : memref<64x1xf32, #tpu.memory_space<vmem>>, vector<64x1xf32>,
      %cst_22 = arith.constant dense<true> : vector<64x128xi1>
      %53 = arith.xori %45, %cst_22 : vector<64x128xi1>
      %54 = arith.andi %17, %53 : vector<64x128xi1>
      %c0_23 = arith.constant 0 : index
      %c0_24 = arith.constant 0 : index
      %55 = vector.load %arg10[%c0_23, %c0_24] : memref<64x1xf32, #tpu.memory_space<vmem>>, vector<64x1xf32>
      %cst_25 = arith.constant 0.000000e+00 : f32
      %56 = vector.broadcast %cst_25 : f32 to vector<64x128xf32>
      %57 = arith.select %54, %12, %56 : vector<64x128xi1>, vector<64x128xf32>
      %cst_26 = arith.constant dense<0.000000e+00> : vector<64xf32>
      %58 = vector.multi_reduction <add>, %57, %cst_26 [1] : vector<64x128xf32> to vector<64xf32>
      %59 = vector.shape_cast %58 : vector<64xf32> to vector<64x1xf32>
      %60 = arith.addf %55, %59 : vector<64x1xf32>
      %c0_27 = arith.constant 0 : index
      %c0_28 = arith.constant 0 : index
      %61 = vector.load %arg10[%c0_27, %c0_28] : memref<64x1xf32, #tpu.memory_space<vmem>>, vector<64x1xf32>
      tpu.vector_store %arg10[%c0_27, %c0_28], %60 {strides = array<i32>} : memref<64x1xf32, #tpu.memory_space<vmem>>, vector<64x1xf32>,
    } else {
    }
    %true = arith.constant true
    %30 = arith.xori %27, %true : i1
    %31 = arith.extui %30 : i1 to i32
    %c0_i32_12 = arith.constant 0 : i32
    %32 = arith.cmpi ne, %31, %c0_i32_12 : i32
    scf.if %32 {
      %c0_15 = arith.constant 0 : index
      %c0_16 = arith.constant 0 : index
      %36 = vector.load %arg9[%c0_15, %c0_16] : memref<64x1xf32, #tpu.memory_space<vmem>>, vector<64x1xf32>
      %cst_17 = arith.constant dense<0.000000e+00> : vector<64xf32>
      %37 = vector.multi_reduction <add>, %13, %cst_17 [1] : vector<64x128xf32> to vector<64xf32>
      %38 = vector.shape_cast %37 : vector<64xf32> to vector<64x1xf32>
      %39 = arith.addf %36, %38 : vector<64x1xf32>
      %c0_18 = arith.constant 0 : index
      %c0_19 = arith.constant 0 : index
      %40 = vector.load %arg9[%c0_18, %c0_19] : memref<64x1xf32, #tpu.memory_space<vmem>>, vector<64x1xf32>
      tpu.vector_store %arg9[%c0_18, %c0_19], %39 {strides = array<i32>} : memref<64x1xf32, #tpu.memory_space<vmem>>, vector<64x1xf32>,
      %c0_20 = arith.constant 0 : index
      %c0_21 = arith.constant 0 : index
      %41 = vector.load %arg10[%c0_20, %c0_21] : memref<64x1xf32, #tpu.memory_space<vmem>>, vector<64x1xf32>
      %cst_22 = arith.constant 0.000000e+00 : f32
      %42 = vector.broadcast %cst_22 : f32 to vector<64x128xf32>
      %43 = arith.select %17, %12, %42 : vector<64x128xi1>, vector<64x128xf32>
      %cst_23 = arith.constant dense<0.000000e+00> : vector<64xf32>
      %44 = vector.multi_reduction <add>, %43, %cst_23 [1] : vector<64x128xf32> to vector<64xf32>
      %45 = vector.shape_cast %44 : vector<64xf32> to vector<64x1xf32>
      %46 = arith.addf %41, %45 : vector<64x1xf32>
      %c0_24 = arith.constant 0 : index
      %c0_25 = arith.constant 0 : index
      %47 = vector.load %arg10[%c0_24, %c0_25] : memref<64x1xf32, #tpu.memory_space<vmem>>, vector<64x1xf32>
      tpu.vector_store %arg10[%c0_24, %c0_25], %46 {strides = array<i32>} : memref<64x1xf32, #tpu.memory_space<vmem>>, vector<64x1xf32>,
    } else {
    }
    %c0_i32_13 = arith.constant 0 : i32
    %33 = arith.cmpi eq, %arg1, %c0_i32_13 : i32
    %34 = arith.extui %33 : i1 to i32
    %c0_i32_14 = arith.constant 0 : i32
    %35 = arith.cmpi ne, %34, %c0_i32_14 : i32
    scf.if %35 {
      %c0_15 = arith.constant 0 : index
      %c0_16 = arith.constant 0 : index
      %36 = vector.load %arg6[%c0_15, %c0_16] : memref<64x1xf32, #tpu.memory_space<vmem>>, vector<64x1xf32>
      %cst_17 = arith.constant 0.000000e+00 : f32
      %37 = vector.broadcast %cst_17 : f32 to vector<64x1xf32>
      %38 = arith.cmpf ogt, %36, %37 : vector<64x1xf32>
      %c0_18 = arith.constant 0 : index
      %c0_19 = arith.constant 0 : index
      %39 = vector.load %arg10[%c0_18, %c0_19] : memref<64x1xf32, #tpu.memory_space<vmem>>, vector<64x1xf32>
      %c0_20 = arith.constant 0 : index
      %c0_21 = arith.constant 0 : index
      %40 = vector.load %arg9[%c0_20, %c0_21] : memref<64x1xf32, #tpu.memory_space<vmem>>, vector<64x1xf32>
      %41 = math.log %40 : vector<64x1xf32>
      %42 = arith.mulf %41, %36 : vector<64x1xf32>
      %43 = arith.subf %39, %42 : vector<64x1xf32>
      %cst_22 = arith.constant 1.000000e+00 : f32
      %44 = vector.broadcast %cst_22 : f32 to vector<64x1xf32>
      %45 = arith.select %38, %36, %44 : vector<64x1xi1>, vector<64x1xf32>
      %46 = arith.divf %43, %45 : vector<64x1xf32>
      %cst_23 = arith.constant 0.000000e+00 : f32
      %47 = vector.broadcast %cst_23 : f32 to vector<64x1xf32>
      %48 = arith.select %38, %46, %47 : vector<64x1xi1>, vector<64x1xf32>
      %cst_24 = arith.constant 0.000000e+00 : f32
      %49 = vector.broadcast %cst_24 : f32 to vector<64x1xf32>
      %50 = arith.subf %49, %48 : vector<64x1xf32>
      %cst_25 = arith.constant 1.000000e-01 : f32
      %51 = vector.broadcast %cst_25 : f32 to vector<64x1xf32>
      %52 = arith.mulf %50, %51 : vector<64x1xf32>
      %c0_26 = arith.constant 0 : index
      %c0_27 = arith.constant 0 : index
      %53 = vector.load %arg7[%c0_26, %c0_27] : memref<64x1xf32, #tpu.memory_space<vmem>>, vector<64x1xf32>
      tpu.vector_store %arg7[%c0_26, %c0_27], %52 {strides = array<i32>} : memref<64x1xf32, #tpu.memory_space<vmem>>, vector<64x1xf32>,
      %54 = arith.extui %38 : vector<64x1xi1> to vector<64x1xi32>
      %55 = arith.sitofp %54 : vector<64x1xi32> to vector<64x1xf32>
      %c0_28 = arith.constant 0 : index
      %c0_29 = arith.constant 0 : index
      %56 = vector.load %arg8[%c0_28, %c0_29] : memref<64x1xf32, #tpu.memory_space<vmem>>, vector<64x1xf32>
      tpu.vector_store %arg8[%c0_28, %c0_29], %55 {strides = array<i32>} : memref<64x1xf32, #tpu.memory_space<vmem>>, vector<64x1xf32>,
    } else {
    }
    return
  }
  func.func @transform_0(%arg0: i32, %arg1: i32) -> (i32, i32) {
    %c0_i32 = arith.constant 0 : i32
    %c0_i32_0 = arith.constant 0 : i32
    return %arg0, %c0_i32 : i32, i32
  }
  func.func @transform_1(%arg0: i32, %arg1: i32) -> (i32, i32) {
    %c0_i32 = arith.constant 0 : i32
    %c0_i32_0 = arith.constant 0 : i32
    %c0_i32_1 = arith.constant 0 : i32
    return %c0_i32, %c0_i32_0 : i32, i32
  }
  func.func @transform_2(%arg0: i32, %arg1: i32) -> (i32, i32) {
    %c0_i32 = arith.constant 0 : i32
    %c0_i32_0 = arith.constant 0 : i32
    return %arg0, %c0_i32 : i32, i32
  }
  func.func @transform_3(%arg0: i32, %arg1: i32) -> (i32, i32) {
    %c0_i32 = arith.constant 0 : i32
    %c0_i32_0 = arith.constant 0 : i32
    %c0_i32_1 = arith.constant 0 : i32
    return %c0_i32, %c0_i32_0 : i32, i32
  }
  func.func @transform_4(%arg0: i32, %arg1: i32) -> (i32, i32) {
    %c0_i32 = arith.constant 0 : i32
    %c0_i32_0 = arith.constant 0 : i32
    return %arg0, %c0_i32 : i32, i32
  }
  func.func @transform_5(%arg0: i32, %arg1: i32) -> (i32, i32) {
    %c0_i32 = arith.constant 0 : i32
    %c0_i32_0 = arith.constant 0 : i32
    return %arg0, %c0_i32 : i32, i32
  }
  func.func @transform_6(%arg0: i32, %arg1: i32) -> (i32, i32) {
    %c0_i32 = arith.constant 0 : i32
    %c0_i32_0 = arith.constant 0 : i32
    return %arg0, %c0_i32 : i32, i32
  }
}

</mosaic_0001>

<llo_original>
// kernel: tpu_custom_call.1
$region0: #{tpu_custom_call.1}
  #allocation0 [shape = 'u32[]', space=smem, size = 0x4, offset = 0x4, fixed_abs, tag = 'smem constant byte address 0x4 - core index']
  #allocation1 [shape = 'u32[144,128]{1,0:T(1,128)}', space=vmem, size = 0x12000, scoped, tag = 'internal scratch']
  #allocation2 [shape = 'f32[64,1]{1,0:T(8,128)}', space=vmem, size = 0x8000, scoped, tag = 'scratch operand']
  #allocation3 [shape = 'f32[64,1]{1,0:T(8,128)}', space=vmem, size = 0x8000, scoped, tag = 'scratch operand']
  %s0 = inlined_call_operand.vmem [shape: f32[128,32], index: 0, kind: input, shape index: {}]
  %s1 = inlined_call_operand.vmem [shape: f32[128,32], index: 1, kind: input, shape index: {}]
  %s2 = inlined_call_operand.vmem [shape: s32[128,1], index: 2, kind: input, shape index: {}]
  %s3 = inlined_call_operand.vmem [shape: s32[1,128], index: 3, kind: input, shape index: {}]
  %s4 = inlined_call_operand.vmem [shape: f32[128,1], index: 4, kind: input, shape index: {}]
  %s5 = inlined_call_operand.vmem [shape: f32[128,1], index: 5, kind: output, shape index: {0}]
  %s6 = inlined_call_operand.vmem [shape: f32[128,1], index: 6, kind: output, shape index: {1}]
  %7 = xla_tuple %s5, %s6
  %s8 = sld [smem:[#allocation0]]
  $region77: #{tpu_custom_call.1} parent=0
    _
  %s10 = ssub.s32 1, %s8
  %s11 = scalar_select 0, %s10, %s8
  loop: start=0, step=1, limit=4
  $region2: #{tpu_custom_call.1} parent=0 // loop_pre_header
    _
  $region3: #{tpu_custom_call.1} parent=0 // loop_header
    %s13 = sphi 0, %s17
    %p14 = scmp.ge.s32.totalorder %s13, 4
    %s20 = sphi 0, %s32
    %s21 = sphi 0, %s28
    %s22 = sphi 0, %s20
    %s23 = sphi 0, %s21
    %s24 = sphi 0, %s22
    %s25 = sphi 0, %s23
    %s35 = sphi 0, %s37
    %s38 = sphi 0, %s35
    %s39 = sphi 0, %s38
    %s55 = sphi 0, %s39
    %s59 = sphi 0, %s59
    %s61 = sphi 0, %s59
    %s62 = sphi 0, %s61
    %s76 = sphi 0, %s62
    %s82 = sphi 0, %s84
    %s85 = sphi 0, %s82
    %s86 = sphi 0, %s85
    %s102 = sphi 0, %s86
    %s106 = sphi 0, %s106
    %s108 = sphi 0, %s106
    %s109 = sphi 0, %s108
    %s123 = sphi 0, %s109
    %s129 = sphi 0, %s131
    %s132 = sphi 0, %s129
    %s133 = sphi 0, %s132
    %s149 = sphi 0, %s133
    %s155 = sphi 0, %s157
    %s158 = sphi 0, %s155
    %s159 = sphi 0, %s158
    %s175 = sphi 0, %s159
    %s181 = sphi 0, %s183
    %s184 = sphi 0, %s181
    %s185 = sphi 0, %s184
    %s201 = sphi 0, %s185
  $region4: #{tpu_custom_call.1} parent=0 // loop_header_branch
    %16 = sbr.rel (%p14) target = $region8
  $region5: #{tpu_custom_call.1} parent=0 // loop_body
    %s18 = ssub.s32 %s13, 1
    %s19 = ssub.s32 %s13, 2
    %s26 = sadd.s32 1, %s21
    %p27 = scmp.ge.s32.totalorder %s26, 1
    %s28 = scalar_select %p27, 0, %s26
    %s29 = sadd.s32 1, %s20
    %s30 = scalar_select %p27, %s29, %s20
    %p31 = scmp.ge.s32.totalorder %s30, 2
    %s32 = scalar_select %p31, 0, %s30
    %s33 = ssub.s32 %s20, %s32
    %p34 = scmp.eq.s32.totalorder %s33, 0
    %s36 = sadd.s32 %s35, 1
    %s37 = scalar_select %p34, %s35, %s36
    %p40 = pneg %p34
    %p41 = scmp.eq.s32.totalorder %s13, 1
    %p42 = por %p40, %p41
    %p43 = scmp.ne.s32.totalorder %s35, %s38
    %p44 = scmp.eq.s32.totalorder %s13, 0
    %p45 = por %p43, %p44
    %p46 = scmp.ne.s32.totalorder %s35, %s38
    %p47 = scmp.eq.s32.totalorder %s18, 1
    %p48 = por %p46, %p47
    %p49 = scmp.ne.s32.totalorder %s38, %s39
    %p50 = scmp.eq.s32.totalorder %s18, 0
    %p51 = por %p49, %p50
    %p52 = scmp.ne.s32.totalorder %s38, %s39
    %p53 = scmp.eq.s32.totalorder %s19, 1
    %p54 = por %p52, %p53
    %p56 = scmp.ne.s32.totalorder %s39, %s55
    %p57 = scmp.eq.s32.totalorder %s19, 0
    %p58 = por %p56, %p57
    %s60 = sadd.s32 %s59, 1
    %p63 = scmp.eq.s32.totalorder %s13, 1
    %p64 = scmp.ne.s32.totalorder %s59, %s61
    %p65 = scmp.eq.s32.totalorder %s13, 0
    %p66 = por %p64, %p65
    %p67 = scmp.ne.s32.totalorder %s59, %s61
    %p68 = scmp.eq.s32.totalorder %s18, 1
    %p69 = por %p67, %p68
    %p70 = scmp.ne.s32.totalorder %s61, %s62
    %p71 = scmp.eq.s32.totalorder %s18, 0
    %p72 = por %p70, %p71
    %p73 = scmp.ne.s32.totalorder %s61, %s62
    %p74 = scmp.eq.s32.totalorder %s19, 1
    %p75 = por %p73, %p74
    %p77 = scmp.ne.s32.totalorder %s62, %s76
    %p78 = scmp.eq.s32.totalorder %s19, 0
    %p79 = por %p77, %p78
    %s80 = ssub.s32 %s20, %s32
    %p81 = scmp.eq.s32.totalorder %s80, 0
    %s83 = sadd.s32 %s82, 1
    %s84 = scalar_select %p81, %s82, %s83
    %p87 = pneg %p81
    %p88 = scmp.eq.s32.totalorder %s13, 1
    %p89 = por %p87, %p88
    %p90 = scmp.ne.s32.totalorder %s82, %s85
    %p91 = scmp.eq.s32.totalorder %s13, 0
    %p92 = por %p90, %p91
    %p93 = scmp.ne.s32.totalorder %s82, %s85
    %p94 = scmp.eq.s32.totalorder %s18, 1
    %p95 = por %p93, %p94
    %p96 = scmp.ne.s32.totalorder %s85, %s86
    %p97 = scmp.eq.s32.totalorder %s18, 0
    %p98 = por %p96, %p97
    %p99 = scmp.ne.s32.totalorder %s85, %s86
    %p100 = scmp.eq.s32.totalorder %s19, 1
    %p101 = por %p99, %p100
    %p103 = scmp.ne.s32.totalorder %s86, %s102
    %p104 = scmp.eq.s32.totalorder %s19, 0
    %p105 = por %p103, %p104
    %s107 = sadd.s32 %s106, 1
    %p110 = scmp.eq.s32.totalorder %s13, 1
    %p111 = scmp.ne.s32.totalorder %s106, %s108
    %p112 = scmp.eq.s32.totalorder %s13, 0
    %p113 = por %p111, %p112
    %p114 = scmp.ne.s32.totalorder %s106, %s108
    %p115 = scmp.eq.s32.totalorder %s18, 1
    %p116 = por %p114, %p115
    %p117 = scmp.ne.s32.totalorder %s108, %s109
    %p118 = scmp.eq.s32.totalorder %s18, 0
    %p119 = por %p117, %p118
    %p120 = scmp.ne.s32.totalorder %s108, %s109
    %p121 = scmp.eq.s32.totalorder %s19, 1
    %p122 = por %p120, %p121
    %p124 = scmp.ne.s32.totalorder %s109, %s123
    %p125 = scmp.eq.s32.totalorder %s19, 0
    %p126 = por %p124, %p125
    %s127 = ssub.s32 %s20, %s32
    %p128 = scmp.eq.s32.totalorder %s127, 0
    %s130 = sadd.s32 %s129, 1
    %s131 = scalar_select %p128, %s129, %s130
    %p134 = pneg %p128
    %p135 = scmp.eq.s32.totalorder %s13, 1
    %p136 = por %p134, %p135
    %p137 = scmp.ne.s32.totalorder %s129, %s132
    %p138 = scmp.eq.s32.totalorder %s13, 0
    %p139 = por %p137, %p138
    %p140 = scmp.ne.s32.totalorder %s129, %s132
    %p141 = scmp.eq.s32.totalorder %s18, 1
    %p142 = por %p140, %p141
    %p143 = scmp.ne.s32.totalorder %s132, %s133
    %p144 = scmp.eq.s32.totalorder %s18, 0
    %p145 = por %p143, %p144
    %p146 = scmp.ne.s32.totalorder %s132, %s133
    %p147 = scmp.eq.s32.totalorder %s19, 1
    %p148 = por %p146, %p147
    %p150 = scmp.ne.s32.totalorder %s133, %s149
    %p151 = scmp.eq.s32.totalorder %s19, 0
    %p152 = por %p150, %p151
    %s153 = ssub.s32 %s20, %s32
    %p154 = scmp.eq.s32.totalorder %s153, 0
    %s156 = sadd.s32 %s155, 1
    %s157 = scalar_select %p154, %s155, %s156
    %p160 = pneg %p154
    %p161 = scmp.eq.s32.totalorder %s13, 1
    %p162 = por %p160, %p161
    %p163 = scmp.ne.s32.totalorder %s155, %s158
    %p164 = scmp.eq.s32.totalorder %s13, 0
    %p165 = por %p163, %p164
    %p166 = scmp.ne.s32.totalorder %s155, %s158
    %p167 = scmp.eq.s32.totalorder %s18, 1
    %p168 = por %p166, %p167
    %p169 = scmp.ne.s32.totalorder %s158, %s159
    %p170 = scmp.eq.s32.totalorder %s18, 0
    %p171 = por %p169, %p170
    %p172 = scmp.ne.s32.totalorder %s158, %s159
    %p173 = scmp.eq.s32.totalorder %s19, 1
    %p174 = por %p172, %p173
    %p176 = scmp.ne.s32.totalorder %s159, %s175
    %p177 = scmp.eq.s32.totalorder %s19, 0
    %p178 = por %p176, %p177
    %s179 = ssub.s32 %s20, %s32
    %p180 = scmp.eq.s32.totalorder %s179, 0
    %s182 = sadd.s32 %s181, 1
    %s183 = scalar_select %p180, %s181, %s182
    %p186 = pneg %p180
    %p187 = scmp.eq.s32.totalorder %s13, 1
    %p188 = por %p186, %p187
    %p189 = scmp.ne.s32.totalorder %s181, %s184
    %p190 = scmp.eq.s32.totalorder %s13, 0
    %p191 = por %p189, %p190
    %p192 = scmp.ne.s32.totalorder %s181, %s184
    %p193 = scmp.eq.s32.totalorder %s18, 1
    %p194 = por %p192, %p193
    %p195 = scmp.ne.s32.totalorder %s184, %s185
    %p196 = scmp.eq.s32.totalorder %s18, 0
    %p197 = por %p195, %p196
    %p198 = scmp.ne.s32.totalorder %s184, %s185
    %p199 = scmp.eq.s32.totalorder %s19, 1
    %p200 = por %p198, %p199
    %p202 = scmp.ne.s32.totalorder %s185, %s201
    %p203 = scmp.eq.s32.totalorder %s19, 0
    %p204 = por %p202, %p203
    %p205 = scmp.le.s32.totalorder 1, %s13
    %p206 = scmp.lt.s32.totalorder %s13, 3
    %p207 = pnand %p205, %p206
    %p208 = pneg %p207
    // Predicated region
    $region9: #{tpu_custom_call.1} parent=5 // pred_check
      _
    $region10: #{tpu_custom_call.1} parent=5 // pred_check_branch
      %210 = sbr.rel (%p207) target = $region12
    $region11: #{tpu_custom_call.1} parent=5 // pred_region
      %s211 = ssub.s32 %s13, 1
      // Predicated region
      $region13: #{tpu_custom_call.1} parent=11 // pred_check
        %p212 = pneg %p72
      $region14: #{tpu_custom_call.1} parent=11 // pred_check_branch
        %214 = sbr.rel (%p212) target = $region16
      $region15: #{tpu_custom_call.1} parent=11 // pred_region
        _
      $region16: #{tpu_custom_call.1} parent=11 // pred_fallthru
        _
      // Predicated region
      $region17: #{tpu_custom_call.1} parent=11 // pred_check
        %p215 = pneg %p119
      $region18: #{tpu_custom_call.1} parent=11 // pred_check_branch
        %217 = sbr.rel (%p215) target = $region20
      $region19: #{tpu_custom_call.1} parent=11 // pred_region
        _
      $region20: #{tpu_custom_call.1} parent=11 // pred_fallthru
        _
    $region12: #{tpu_custom_call.1} parent=5 // pred_fallthru
      _
    %p218 = scmp.lt.s32.totalorder %s13, 2
    // Predicated region
    $region21: #{tpu_custom_call.1} parent=5 // pred_check
      %p219 = pneg %p218
    $region22: #{tpu_custom_call.1} parent=5 // pred_check_branch
      %221 = sbr.rel (%p219) target = $region24
    $region23: #{tpu_custom_call.1} parent=5 // pred_region
      // Predicated region
      $region25: #{tpu_custom_call.1} parent=23 // pred_check
        %p222 = pneg %p45
      $region26: #{tpu_custom_call.1} parent=23 // pred_check_branch
        %224 = sbr.rel (%p222) target = $region28
      $region27: #{tpu_custom_call.1} parent=23 // pred_region
        %s225 = smul.u32 8, %s20
        %p226 = scmp.lt.s32.totalorder %s225, 15
        %s227 = scalar_select %p226, %s225, 15
        %s228 = smul.addr %s227, 8
        %s229 = scalar_lea.vmem %s0, %s228
        %s230 = smul.u32 8, %s20
      $region28: #{tpu_custom_call.1} parent=23 // pred_fallthru
        _
      // Predicated region
      $region29: #{tpu_custom_call.1} parent=23 // pred_check
        %p231 = pneg %p92
      $region30: #{tpu_custom_call.1} parent=23 // pred_check_branch
        %233 = sbr.rel (%p231) target = $region32
      $region31: #{tpu_custom_call.1} parent=23 // pred_region
        %s234 = smul.u32 8, %s20
        %p235 = scmp.lt.s32.totalorder %s234, 15
        %s236 = scalar_select %p235, %s234, 15
        %s237 = smul.addr %s236, 8
        %s238 = scalar_lea.vmem %s2, %s237
        %s239 = smul.u32 8, %s20
      $region32: #{tpu_custom_call.1} parent=23 // pred_fallthru
        _
      // Predicated region
      $region33: #{tpu_custom_call.1} parent=23 // pred_check
        %p240 = pneg %p139
      $region34: #{tpu_custom_call.1} parent=23 // pred_check_branch
        %242 = sbr.rel (%p240) target = $region36
      $region35: #{tpu_custom_call.1} parent=23 // pred_region
        %s243 = smul.u32 8, %s20
        %p244 = scmp.lt.s32.totalorder %s243, 15
        %s245 = scalar_select %p244, %s243, 15
        %s246 = smul.addr %s245, 8
        %s247 = scalar_lea.vmem %s4, %s246
        %s248 = smul.u32 8, %s20
      $region36: #{tpu_custom_call.1} parent=23 // pred_fallthru
        _
    $region24: #{tpu_custom_call.1} parent=5 // pred_fallthru
      _
    %p249 = scmp.le.s32.totalorder 1, %s13
    %p250 = scmp.lt.s32.totalorder %s13, 3
    %p251 = pnand %p249, %p250
    %p252 = pneg %p251
    // Predicated region
    $region37: #{tpu_custom_call.1} parent=5 // pred_check
      _
    $region38: #{tpu_custom_call.1} parent=5 // pred_check_branch
      %254 = sbr.rel (%p251) target = $region40
    $region39: #{tpu_custom_call.1} parent=5 // pred_region
      %s255 = ssub.s32 %s13, 1
      %s256 = smul.u32 8, %s22
      %p257 = scmp.lt.s32.totalorder %s256, 15
      %s258 = scalar_select %p257, %s256, 15
      %s259 = smul.addr %s258, 8
      %s260 = scalar_lea.vmem %s0, %s259
      %p261 = pneg %p51
      %p262 = pneg %p48
      %p263 = pneg %p72
      %p264 = pneg %p69
      %s265 = smul.u32 8, %s22
      %p266 = scmp.lt.s32.totalorder %s265, 15
      %s267 = scalar_select %p266, %s265, 15
      %s268 = smul.addr %s267, 8
      %s269 = scalar_lea.vmem %s2, %s268
      %p270 = pneg %p98
      %p271 = pneg %p95
      %p272 = pneg %p119
      %p273 = pneg %p116
      %s274 = smul.u32 8, %s22
      %p275 = scmp.lt.s32.totalorder %s274, 15
      %s276 = scalar_select %p275, %s274, 15
      %s277 = smul.addr %s276, 8
      %s278 = scalar_lea.vmem %s4, %s277
      %p279 = pneg %p145
      %p280 = pneg %p142
      %p281 = pneg %p171
      %p282 = pneg %p168
      %s283 = smul.u32 8, %s22
      %p284 = scmp.lt.s32.totalorder %s283, 15
      %s285 = scalar_select %p284, %s283, 15
      %s286 = smul.addr %s285, 8
      %s287 = scalar_lea.vmem %s5, %s286
      %p288 = pneg %p197
      %p289 = pneg %p194
      %s290 = smul.u32 8, %s22
      %p291 = scmp.lt.s32.totalorder %s290, 15
      %s292 = scalar_select %p291, %s290, 15
      %s293 = smul.addr %s292, 8
      %s294 = scalar_lea.vmem %s6, %s293
      %s295 = smul.u32 8, %s22
      %p296 = scmp.lt.s32.totalorder %s295, 15
      %s297 = scalar_select %p296, %s295, 15
      %s298 = smul.addr %s297, 8
      %s299 = scalar_lea.vmem %s0, %s298
      %s300 = smul.u32 8, %s22
      %s301 = smul.u32 8, %s22
      %p302 = scmp.lt.s32.totalorder %s301, 15
      %s303 = scalar_select %p302, %s301, 15
      %s304 = smul.addr %s303, 8
      %s305 = scalar_lea.vmem %s2, %s304
      %s306 = smul.u32 8, %s22
      %s307 = smul.u32 8, %s22
      %p308 = scmp.lt.s32.totalorder %s307, 15
      %s309 = scalar_select %p308, %s307, 15
      %s310 = smul.addr %s309, 8
      %s311 = scalar_lea.vmem %s4, %s310
      %s312 = smul.u32 8, %s22
      %s313 = smul.u32 8, %s22
      %p314 = scmp.lt.s32.totalorder %s313, 15
      %s315 = scalar_select %p314, %s313, 15
      %s316 = smul.addr %s315, 8
      %s317 = scalar_lea.vmem %s5, %s316
      %s318 = smul.u32 8, %s22
      %s319 = smul.u32 8, %s22
      %p320 = scmp.lt.s32.totalorder %s319, 15
      %s321 = scalar_select %p320, %s319, 15
      %s322 = smul.addr %s321, 8
      %s323 = scalar_lea.vmem %s6, %s322
      %s324 = smul.u32 8, %s22
      %p325 = scmp.eq.s32.totalorder %s23, 0
      // Predicated region
      $region41: #{tpu_custom_call.1} parent=39 // pred_check
        %p326 = pneg %p325
      $region42: #{tpu_custom_call.1} parent=39 // pred_check_branch
        %328 = sbr.rel (%p326) target = $region44
      $region43: #{tpu_custom_call.1} parent=39 // pred_region
        %vm329 = vcmask 7168
        %330 = vst.msk [vmem:[#allocation2] sm:$0xff] %vm329, 0.0
        %331 = vst.msk [vmem:[#allocation2 + $0x8] sm:$0xff] %vm329, 0.0
        %332 = vst.msk [vmem:[#allocation2 + $0x10] sm:$0xff] %vm329, 0.0
        %333 = vst.msk [vmem:[#allocation2 + $0x18] sm:$0xff] %vm329, 0.0
        %334 = vst.msk [vmem:[#allocation2 + $0x20] sm:$0xff] %vm329, 0.0
        %335 = vst.msk [vmem:[#allocation2 + $0x28] sm:$0xff] %vm329, 0.0
        %336 = vst.msk [vmem:[#allocation2 + $0x30] sm:$0xff] %vm329, 0.0
        %337 = vst.msk [vmem:[#allocation2 + $0x38] sm:$0xff] %vm329, 0.0
        %338 = vst.msk [vmem:[#allocation3] sm:$0xff] %vm329, 0.0
        %339 = vst.msk [vmem:[#allocation3 + $0x8] sm:$0xff] %vm329, 0.0
        %340 = vst.msk [vmem:[#allocation3 + $0x10] sm:$0xff] %vm329, 0.0
        %341 = vst.msk [vmem:[#allocation3 + $0x18] sm:$0xff] %vm329, 0.0
        %342 = vst.msk [vmem:[#allocation3 + $0x20] sm:$0xff] %vm329, 0.0
        %343 = vst.msk [vmem:[#allocation3 + $0x28] sm:$0xff] %vm329, 0.0
        %344 = vst.msk [vmem:[#allocation3 + $0x30] sm:$0xff] %vm329, 0.0
        %345 = vst.msk [vmem:[#allocation3 + $0x38] sm:$0xff] %vm329, 0.0
      $region44: #{tpu_custom_call.1} parent=39 // pred_fallthru
        _
      %s346 = smul.u32 %s23, 128
      %s347 = scalar_lea.vmem %s1, %s346
      %v348 = vld [vmem:[%s347] sm:$0xff]
      %v349 = vld [vmem:[%s347 + $0x8] sm:$0xff]
      %v350 = vld [vmem:[%s347 + $0x10] sm:$0xff]
      %v351 = vld [vmem:[%s347 + $0x18] sm:$0xff]
      %v352 = vld [vmem:[%s347 + $0x20] sm:$0xff]
      %v353 = vld [vmem:[%s347 + $0x28] sm:$0xff]
      %v354 = vld [vmem:[%s347 + $0x30] sm:$0xff]
      %v355 = vld [vmem:[%s347 + $0x38] sm:$0xff]
      %v356 = vld [vmem:[%s347 + $0x40] sm:$0xff]
      %v357 = vld [vmem:[%s347 + $0x48] sm:$0xff]
      %v358 = vld [vmem:[%s347 + $0x50] sm:$0xff]
      %v359 = vld [vmem:[%s347 + $0x58] sm:$0xff]
      %v360 = vld [vmem:[%s347 + $0x60] sm:$0xff]
      %v361 = vld [vmem:[%s347 + $0x68] sm:$0xff]
      %v362 = vld [vmem:[%s347 + $0x70] sm:$0xff]
      %v363 = vld [vmem:[%s347 + $0x78] sm:$0xff]
      %s364 = sshra.s32 %s346, 7
      %s365 = sand.u32 %s346, 127
      %s366 = scalar_lea.vmem %s3, %s364
      %v367 = vld [vmem:[%s366] sm:$0x1]
      %v368 = vld [vmem:[%s299] sm:$0xff]
      %v369 = vld [vmem:[%s299 + $0x8] sm:$0xff]
      %v370 = vld [vmem:[%s299 + $0x10] sm:$0xff]
      %v371 = vld [vmem:[%s299 + $0x18] sm:$0xff]
      %v372 = vld [vmem:[%s299 + $0x20] sm:$0xff]
      %v373 = vld [vmem:[%s299 + $0x28] sm:$0xff]
      %v374 = vld [vmem:[%s299 + $0x30] sm:$0xff]
      %v375 = vld [vmem:[%s299 + $0x38] sm:$0xff]
      %vm376 = vcmask 261120
      %v378 = vsel %vm376, %v368, 0
      %v381 = vsel %vm376, %v369, 0
      %v384 = vsel %vm376, %v370, 0
      %v387 = vsel %vm376, %v371, 0
      %v390 = vsel %vm376, %v372, 0
      %v393 = vsel %vm376, %v373, 0
      %v396 = vsel %vm376, %v374, 0
      %v399 = vsel %vm376, %v375, 0
      %v402 = vsel %vm376, %v348, 0
      %v405 = vsel %vm376, %v349, 0
      %v408 = vsel %vm376, %v350, 0
      %v411 = vsel %vm376, %v351, 0
      %v414 = vsel %vm376, %v352, 0
      %v417 = vsel %vm376, %v353, 0
      %v420 = vsel %vm376, %v354, 0
      %v423 = vsel %vm376, %v355, 0
      %v426 = vsel %vm376, %v356, 0
      %v429 = vsel %vm376, %v357, 0
      %v432 = vsel %vm376, %v358, 0
      %v435 = vsel %vm376, %v359, 0
      %v438 = vsel %vm376, %v360, 0
      %v441 = vsel %vm376, %v361, 0
      %v444 = vsel %vm376, %v362, 0
      %v447 = vsel %vm376, %v363, 0
      %449 = vmatprep.subr.mxu0 0.0
      %450 = vmatpush1.xpose.msra.mxu0 %v402
      %451 = vmatprep.subr.mxu0 0.0
      %452 = vmatpush1.xpose.msra.mxu0 %v405
      %453 = vmatprep.subr.mxu0 0.0
      %454 = vmatpush1.xpose.msra.mxu0 %v408
      %455 = vmatprep.subr.mxu0 0.0
      %456 = vmatpush1.xpose.msra.mxu0 %v411
      %457 = vmatprep.subr.mxu0 0.0
      %458 = vmatpush1.xpose.msra.mxu0 %v414
      %459 = vmatprep.subr.mxu0 0.0
      %460 = vmatpush1.xpose.msra.mxu0 %v417
      %461 = vmatprep.subr.mxu0 0.0
      %462 = vmatpush1.xpose.msra.mxu0 %v420
      %463 = vmatprep.subr.mxu0 0.0
      %464 = vmatpush1.xpose.msra.mxu0 %v423
      %465 = vmatprep.subr.mxu0 0.0
      %466 = vmatpush1.xpose.msra.mxu0 %v426
      %467 = vmatprep.subr.mxu0 0.0
      %468 = vmatpush1.xpose.msra.mxu0 %v429
      %469 = vmatprep.subr.mxu0 0.0
      %470 = vmatpush1.xpose.msra.mxu0 %v432
      %471 = vmatprep.subr.mxu0 0.0
      %472 = vmatpush1.xpose.msra.mxu0 %v435
      %473 = vmatprep.subr.mxu0 0.0
      %474 = vmatpush1.xpose.msra.mxu0 %v438
      %475 = vmatprep.subr.mxu0 0.0
      %476 = vmatpush1.xpose.msra.mxu0 %v441
      %477 = vmatprep.subr.mxu0 0.0
      %478 = vmatpush1.xpose.msra.mxu0 %v444
      %479 = vmatprep.subr.mxu0 0.0
      %480 = vmatpush1.xpose.msra.mxu0 %v447
      %481 = vmatprep.subr.mxu0 0.0
      %482 = vmatpush1.xpose.msra.mxu0 0.0
      %483 = vmatprep.subr.mxu0 0.0
      %484 = vmatpush1.xpose.msra.mxu0 0.0
      %485 = vmatprep.subr.mxu0 0.0
      %486 = vmatpush1.xpose.msra.mxu0 0.0
      %487 = vmatprep.subr.mxu0 0.0
      %488 = vmatpush1.xpose.msra.mxu0 0.0
      %489 = vmatprep.subr.mxu0 0.0
      %490 = vmatpush1.xpose.msra.mxu0 0.0
      %491 = vmatprep.subr.mxu0 0.0
      %492 = vmatpush1.xpose.msra.mxu0 0.0
      %493 = vmatprep.subr.mxu0 0.0
      %494 = vmatpush1.xpose.msra.mxu0 0.0
      %495 = vmatprep.subr.mxu0 0.0
      %496 = vmatpush1.xpose.msra.mxu0 0.0
      %497 = vmatprep.subr.mxu0 0.0
      %498 = vmatpush1.xpose.msra.mxu0 0.0
      %499 = vmatprep.subr.mxu0 0.0
      %500 = vmatpush1.xpose.msra.mxu0 0.0
      %501 = vmatprep.subr.mxu0 0.0
      %502 = vmatpush1.xpose.msra.mxu0 0.0
      %503 = vmatprep.subr.mxu0 0.0
      %504 = vmatpush1.xpose.msra.mxu0 0.0
      %505 = vmatprep.subr.mxu0 0.0
      %506 = vmatpush1.xpose.msra.mxu0 0.0
      %507 = vmatprep.subr.mxu0 0.0
      %508 = vmatpush1.xpose.msra.mxu0 0.0
      %509 = vmatprep.subr.mxu0 0.0
      %510 = vmatpush1.xpose.msra.mxu0 0.0
      %511 = vmatprep.subr.mxu0 0.0
      %512 = vmatpush1.xpose.msra.mxu0 0.0
      %513 = vmatprep.mubr.f32.mxu0 0.0
      %514 = vmatmul.mubr.f32.gmra.mrb[0].mxu0 %v378
      %v515 = vpop.f32.mrb[0].mxu0
      %v516 = vadd.f32 0.0, %v515
      %v517 = vpop.f32.mrb[0].mxu0
      %518 = vmatprep.mubr.f32.mxu0 0.0
      %519 = vmatmul.mubr.f32.gmra.mrb[0].mxu0 %v381
      %v520 = vpop.f32.mrb[0].mxu0
      %v521 = vadd.f32 0.0, %v520
      %v522 = vpop.f32.mrb[0].mxu0
      %523 = vmatprep.mubr.f32.mxu0 0.0
      %524 = vmatmul.mubr.f32.gmra.mrb[0].mxu0 %v384
      %v525 = vpop.f32.mrb[0].mxu0
      %v526 = vadd.f32 0.0, %v525
      %v527 = vpop.f32.mrb[0].mxu0
      %528 = vmatprep.mubr.f32.mxu0 0.0
      %529 = vmatmul.mubr.f32.gmra.mrb[0].mxu0 %v387
      %v530 = vpop.f32.mrb[0].mxu0
      %v531 = vadd.f32 0.0, %v530
      %v532 = vpop.f32.mrb[0].mxu0
      %533 = vmatprep.mubr.f32.mxu0 0.0
      %534 = vmatmul.mubr.f32.gmra.mrb[0].mxu0 %v390
      %v535 = vpop.f32.mrb[0].mxu0
      %v536 = vadd.f32 0.0, %v535
      %v537 = vpop.f32.mrb[0].mxu0
      %538 = vmatprep.mubr.f32.mxu0 0.0
      %539 = vmatmul.mubr.f32.gmra.mrb[0].mxu0 %v393
      %v540 = vpop.f32.mrb[0].mxu0
      %v541 = vadd.f32 0.0, %v540
      %v542 = vpop.f32.mrb[0].mxu0
      %543 = vmatprep.mubr.f32.mxu0 0.0
      %544 = vmatmul.mubr.f32.gmra.mrb[0].mxu0 %v396
      %v545 = vpop.f32.mrb[0].mxu0
      %v546 = vadd.f32 0.0, %v545
      %v547 = vpop.f32.mrb[0].mxu0
      %548 = vmatprep.mubr.f32.mxu0 0.0
      %549 = vmatmul.mubr.f32.gmra.mrb[0].mxu0 %v399
      %v550 = vpop.f32.mrb[0].mxu0
      %v551 = vadd.f32 0.0, %v550
      %v552 = vpop.f32.mrb[0].mxu0
      %553 = vdwg.mxu0
      %v554 = vsub.f32 %v516, 10.0
      %v555 = vsub.f32 %v521, 10.0
      %v556 = vsub.f32 %v526, 10.0
      %v557 = vsub.f32 %v531, 10.0
      %v558 = vsub.f32 %v536, 10.0
      %v559 = vsub.f32 %v541, 10.0
      %v560 = vsub.f32 %v546, 10.0
      %v561 = vsub.f32 %v551, 10.0
      %v562 = vmul.f32 %v554, 1.442695
      %v563 = vpow.pop %v562
      %v564 = vmul.f32 %v555, 1.442695
      %v565 = vpow.pop %v564
      %v566 = vmul.f32 %v556, 1.442695
      %v567 = vpow.pop %v566
      %v568 = vmul.f32 %v557, 1.442695
      %v569 = vpow.pop %v568
      %v570 = vmul.f32 %v558, 1.442695
      %v571 = vpow.pop %v570
      %v572 = vmul.f32 %v559, 1.442695
      %v573 = vpow.pop %v572
      %v574 = vmul.f32 %v560, 1.442695
      %v575 = vpow.pop %v574
      %v576 = vmul.f32 %v561, 1.442695
      %v577 = vpow.pop %v576
      %v578 = vld [vmem:[%s305] sm:$0xff]
      %v579 = vld [vmem:[%s305 + $0x8] sm:$0xff]
      %v580 = vld [vmem:[%s305 + $0x10] sm:$0xff]
      %v581 = vld [vmem:[%s305 + $0x18] sm:$0xff]
      %v582 = vld [vmem:[%s305 + $0x20] sm:$0xff]
      %v583 = vld [vmem:[%s305 + $0x28] sm:$0xff]
      %v584 = vld [vmem:[%s305 + $0x30] sm:$0xff]
      %v585 = vld [vmem:[%s305 + $0x38] sm:$0xff]
      %586 = vset.pattern.permute.xlu0 0
      %587 = vperm.xlu0 %586, %v578
      %v588 = vpop.permute.xlu0 %587
      %589 = vset.pattern.permute.xlu0 0
      %590 = vperm.xlu0 %589, %v579
      %v591 = vpop.permute.xlu0 %590
      %592 = vset.pattern.permute.xlu0 0
      %593 = vperm.xlu0 %592, %v580
      %v594 = vpop.permute.xlu0 %593
      %595 = vset.pattern.permute.xlu0 0
      %596 = vperm.xlu0 %595, %v581
      %v597 = vpop.permute.xlu0 %596
      %598 = vset.pattern.permute.xlu0 0
      %599 = vperm.xlu0 %598, %v582
      %v600 = vpop.permute.xlu0 %599
      %601 = vset.pattern.permute.xlu0 0
      %602 = vperm.xlu0 %601, %v583
      %v603 = vpop.permute.xlu0 %602
      %604 = vset.pattern.permute.xlu0 0
      %605 = vperm.xlu0 %604, %v584
      %v606 = vpop.permute.xlu0 %605
      %607 = vset.pattern.permute.xlu0 0
      %608 = vperm.xlu0 %607, %v585
      %v609 = vpop.permute.xlu0 %608
      %v610 = vlaneseq
      %v611 = vshrl.u32 %v610, 7
      %v612 = vsub.s32 0, %v611
      %v613 = vrot.slane %v367, %v612
      %vm614 = vcmp.eq.s32.totalorder %v588, %v613
      %vm615 = vcmp.eq.s32.totalorder %v591, %v613
      %vm616 = vcmp.eq.s32.totalorder %v594, %v613
      %vm617 = vcmp.eq.s32.totalorder %v597, %v613
      %vm618 = vcmp.eq.s32.totalorder %v600, %v613
      %vm619 = vcmp.eq.s32.totalorder %v603, %v613
      %vm620 = vcmp.eq.s32.totalorder %v606, %v613
      %vm621 = vcmp.eq.s32.totalorder %v609, %v613
      %s622 = smul.u32 %s22, 64
      %s623 = sadd.s32 %s346, 128
      %p624 = scmp.lt.s32.totalorder %s622, %s623
      %s625 = sadd.s32 %s622, 64
      %p626 = scmp.lt.s32.totalorder %s346, %s625
      %p627 = pnand %p624, %p626
      %p628 = pneg %p627
      %p629 = scmp.gt.s32.totalorder %s623, 8
      %p630 = por %p628, %p629
      // Predicated region
      $region45: #{tpu_custom_call.1} parent=39 // pred_check
        %p631 = pneg %p630
      $region46: #{tpu_custom_call.1} parent=39 // pred_check_branch
        %633 = sbr.rel (%p631) target = $region48
      $region47: #{tpu_custom_call.1} parent=39 // pred_region
        %v634 = vlaneseq
        %v635 = vshrl.u32 %v634, 7
        %v636 = vadd.s32 %v635, 8
        %v637 = vadd.s32 %v635, 16
        %v638 = vadd.s32 %v635, 24
        %v639 = vadd.s32 %v635, 32
        %v640 = vadd.s32 %v635, 40
        %v641 = vadd.s32 %v635, 48
        %v642 = vadd.s32 %v635, 56
        %v643 = vstv %s622
        %v644 = vadd.s32 %v643, %v635
        %v645 = vadd.s32 %v643, %v636
        %v646 = vadd.s32 %v643, %v637
        %v647 = vadd.s32 %v643, %v638
        %v648 = vadd.s32 %v643, %v639
        %v649 = vadd.s32 %v643, %v640
        %v650 = vadd.s32 %v643, %v641
        %v651 = vadd.s32 %v643, %v642
        %v652 = vlaneseq
        %v653 = vand.u32 %v652, 127
        %v654 = vstv %s346
        %v655 = vadd.s32 %v654, %v653
        %vm656 = vcmp.eq.s32.totalorder %v644, %v655
        %vm657 = vcmp.eq.s32.totalorder %v645, %v655
        %vm658 = vcmp.eq.s32.totalorder %v646, %v655
        %vm659 = vcmp.eq.s32.totalorder %v647, %v655
        %vm660 = vcmp.eq.s32.totalorder %v648, %v655
        %vm661 = vcmp.eq.s32.totalorder %v649, %v655
        %vm662 = vcmp.eq.s32.totalorder %v650, %v655
        %vm663 = vcmp.eq.s32.totalorder %v651, %v655
        %vm664 = vcmp.ge.s32.totalorder %v655, 8
        %vm665 = vmor %vm656, %vm664
        %vm666 = vmor %vm657, %vm664
        %vm667 = vmor %vm658, %vm664
        %vm668 = vmor %vm659, %vm664
        %vm669 = vmor %vm660, %vm664
        %vm670 = vmor %vm661, %vm664
        %vm671 = vmor %vm662, %vm664
        %vm672 = vmor %vm663, %vm664
        %v673 = vld [vmem:[#allocation2] sm:$0xff]
        %v674 = vld [vmem:[#allocation2 + $0x8] sm:$0xff]
        %v675 = vld [vmem:[#allocation2 + $0x10] sm:$0xff]
        %v676 = vld [vmem:[#allocation2 + $0x18] sm:$0xff]
        %v677 = vld [vmem:[#allocation2 + $0x20] sm:$0xff]
        %v678 = vld [vmem:[#allocation2 + $0x28] sm:$0xff]
        %v679 = vld [vmem:[#allocation2 + $0x30] sm:$0xff]
        %v680 = vld [vmem:[#allocation2 + $0x38] sm:$0xff]
        %v681 = vsel %vm665, 0.0, %v563
        %v682 = vsel %vm666, 0.0, %v565
        %v683 = vsel %vm667, 0.0, %v567
        %v684 = vsel %vm668, 0.0, %v569
        %v685 = vsel %vm669, 0.0, %v571
        %v686 = vsel %vm670, 0.0, %v573
        %v687 = vsel %vm671, 0.0, %v575
        %v688 = vsel %vm672, 0.0, %v577
        %689 = vadd.xlane.f32.xlu0 %v681
        %v690 = vpop.xlane.xlu0 %689
        %691 = vadd.xlane.f32.xlu0 %v682
        %v692 = vpop.xlane.xlu0 %691
        %693 = vadd.xlane.f32.xlu0 %v683
        %v694 = vpop.xlane.xlu0 %693
        %695 = vadd.xlane.f32.xlu0 %v684
        %v696 = vpop.xlane.xlu0 %695
        %697 = vadd.xlane.f32.xlu0 %v685
        %v698 = vpop.xlane.xlu0 %697
        %699 = vadd.xlane.f32.xlu0 %v686
        %v700 = vpop.xlane.xlu0 %699
        %701 = vadd.xlane.f32.xlu0 %v687
        %v702 = vpop.xlane.xlu0 %701
        %703 = vadd.xlane.f32.xlu0 %v688
        %v704 = vpop.xlane.xlu0 %703
        %v705 = vadd.f32 %v673, %v690
        %v706 = vadd.f32 %v674, %v692
        %v707 = vadd.f32 %v675, %v694
        %v708 = vadd.f32 %v676, %v696
        %v709 = vadd.f32 %v677, %v698
        %v710 = vadd.f32 %v678, %v700
        %v711 = vadd.f32 %v679, %v702
        %v712 = vadd.f32 %v680, %v704
        %vm713 = vcmask 7168
        %714 = vst.msk [vmem:[#allocation2] sm:$0xff] %vm713, %v705
        %715 = vst.msk [vmem:[#allocation2 + $0x8] sm:$0xff] %vm713, %v706
        %716 = vst.msk [vmem:[#allocation2 + $0x10] sm:$0xff] %vm713, %v707
        %717 = vst.msk [vmem:[#allocation2 + $0x18] sm:$0xff] %vm713, %v708
        %718 = vst.msk [vmem:[#allocation2 + $0x20] sm:$0xff] %vm713, %v709
        %719 = vst.msk [vmem:[#allocation2 + $0x28] sm:$0xff] %vm713, %v710
        %720 = vst.msk [vmem:[#allocation2 + $0x30] sm:$0xff] %vm713, %v711
        %721 = vst.msk [vmem:[#allocation2 + $0x38] sm:$0xff] %vm713, %v712
        %vm722 = vmxor %vm665, 1
        %vm723 = vmxor %vm666, 1
        %vm724 = vmxor %vm667, 1
        %vm725 = vmxor %vm668, 1
        %vm726 = vmxor %vm669, 1
        %vm727 = vmxor %vm670, 1
        %vm728 = vmxor %vm671, 1
        %vm729 = vmxor %vm672, 1
        %vm730 = vmand %vm614, %vm722
        %vm731 = vmand %vm615, %vm723
        %vm732 = vmand %vm616, %vm724
        %vm733 = vmand %vm617, %vm725
        %vm734 = vmand %vm618, %vm726
        %vm735 = vmand %vm619, %vm727
        %vm736 = vmand %vm620, %vm728
        %vm737 = vmand %vm621, %vm729
        %v738 = vld [vmem:[#allocation3] sm:$0xff]
        %v739 = vld [vmem:[#allocation3 + $0x8] sm:$0xff]
        %v740 = vld [vmem:[#allocation3 + $0x10] sm:$0xff]
        %v741 = vld [vmem:[#allocation3 + $0x18] sm:$0xff]
        %v742 = vld [vmem:[#allocation3 + $0x20] sm:$0xff]
        %v743 = vld [vmem:[#allocation3 + $0x28] sm:$0xff]
        %v744 = vld [vmem:[#allocation3 + $0x30] sm:$0xff]
        %v745 = vld [vmem:[#allocation3 + $0x38] sm:$0xff]
        %v746 = vsel %vm730, %v554, 0.0
        %v747 = vsel %vm731, %v555, 0.0
        %v748 = vsel %vm732, %v556, 0.0
        %v749 = vsel %vm733, %v557, 0.0
        %v750 = vsel %vm734, %v558, 0.0
        %v751 = vsel %vm735, %v559, 0.0
        %v752 = vsel %vm736, %v560, 0.0
        %v753 = vsel %vm737, %v561, 0.0
        %754 = vadd.xlane.f32.xlu0 %v746
        %v755 = vpop.xlane.xlu0 %754
        %756 = vadd.xlane.f32.xlu0 %v747
        %v757 = vpop.xlane.xlu0 %756
        %758 = vadd.xlane.f32.xlu0 %v748
        %v759 = vpop.xlane.xlu0 %758
        %760 = vadd.xlane.f32.xlu0 %v749
        %v761 = vpop.xlane.xlu0 %760
        %762 = vadd.xlane.f32.xlu0 %v750
        %v763 = vpop.xlane.xlu0 %762
        %764 = vadd.xlane.f32.xlu0 %v751
        %v765 = vpop.xlane.xlu0 %764
        %766 = vadd.xlane.f32.xlu0 %v752
        %v767 = vpop.xlane.xlu0 %766
        %768 = vadd.xlane.f32.xlu0 %v753
        %v769 = vpop.xlane.xlu0 %768
        %v770 = vadd.f32 %v738, %v755
        %v771 = vadd.f32 %v739, %v757
        %v772 = vadd.f32 %v740, %v759
        %v773 = vadd.f32 %v741, %v761
        %v774 = vadd.f32 %v742, %v763
        %v775 = vadd.f32 %v743, %v765
        %v776 = vadd.f32 %v744, %v767
        %v777 = vadd.f32 %v745, %v769
        %778 = vst.msk [vmem:[#allocation3] sm:$0xff] %vm713, %v770
        %779 = vst.msk [vmem:[#allocation3 + $0x8] sm:$0xff] %vm713, %v771
        %780 = vst.msk [vmem:[#allocation3 + $0x10] sm:$0xff] %vm713, %v772
        %781 = vst.msk [vmem:[#allocation3 + $0x18] sm:$0xff] %vm713, %v773
        %782 = vst.msk [vmem:[#allocation3 + $0x20] sm:$0xff] %vm713, %v774
        %783 = vst.msk [vmem:[#allocation3 + $0x28] sm:$0xff] %vm713, %v775
        %784 = vst.msk [vmem:[#allocation3 + $0x30] sm:$0xff] %vm713, %v776
        %785 = vst.msk [vmem:[#allocation3 + $0x38] sm:$0xff] %vm713, %v777
      $region48: #{tpu_custom_call.1} parent=39 // pred_fallthru
        _
      %p786 = pneg %p630
      // Predicated region
      $region49: #{tpu_custom_call.1} parent=39 // pred_check
        _
      $region50: #{tpu_custom_call.1} parent=39 // pred_check_branch
        %788 = sbr.rel (%p630) target = $region52
      $region51: #{tpu_custom_call.1} parent=39 // pred_region
        %v789 = vld [vmem:[#allocation2] sm:$0xff]
        %v790 = vld [vmem:[#allocation2 + $0x8] sm:$0xff]
        %v791 = vld [vmem:[#allocation2 + $0x10] sm:$0xff]
        %v792 = vld [vmem:[#allocation2 + $0x18] sm:$0xff]
        %v793 = vld [vmem:[#allocation2 + $0x20] sm:$0xff]
        %v794 = vld [vmem:[#allocation2 + $0x28] sm:$0xff]
        %v795 = vld [vmem:[#allocation2 + $0x30] sm:$0xff]
        %v796 = vld [vmem:[#allocation2 + $0x38] sm:$0xff]
        %797 = vadd.xlane.f32.xlu0 %v563
        %v798 = vpop.xlane.xlu0 %797
        %799 = vadd.xlane.f32.xlu0 %v565
        %v800 = vpop.xlane.xlu0 %799
        %801 = vadd.xlane.f32.xlu0 %v567
        %v802 = vpop.xlane.xlu0 %801
        %803 = vadd.xlane.f32.xlu0 %v569
        %v804 = vpop.xlane.xlu0 %803
        %805 = vadd.xlane.f32.xlu0 %v571
        %v806 = vpop.xlane.xlu0 %805
        %807 = vadd.xlane.f32.xlu0 %v573
        %v808 = vpop.xlane.xlu0 %807
        %809 = vadd.xlane.f32.xlu0 %v575
        %v810 = vpop.xlane.xlu0 %809
        %811 = vadd.xlane.f32.xlu0 %v577
        %v812 = vpop.xlane.xlu0 %811
        %v813 = vadd.f32 %v789, %v798
        %v814 = vadd.f32 %v790, %v800
        %v815 = vadd.f32 %v791, %v802
        %v816 = vadd.f32 %v792, %v804
        %v817 = vadd.f32 %v793, %v806
        %v818 = vadd.f32 %v794, %v808
        %v819 = vadd.f32 %v795, %v810
        %v820 = vadd.f32 %v796, %v812
        %vm821 = vcmask 7168
        %822 = vst.msk [vmem:[#allocation2] sm:$0xff] %vm821, %v813
        %823 = vst.msk [vmem:[#allocation2 + $0x8] sm:$0xff] %vm821, %v814
        %824 = vst.msk [vmem:[#allocation2 + $0x10] sm:$0xff] %vm821, %v815
        %825 = vst.msk [vmem:[#allocation2 + $0x18] sm:$0xff] %vm821, %v816
        %826 = vst.msk [vmem:[#allocation2 + $0x20] sm:$0xff] %vm821, %v817
        %827 = vst.msk [vmem:[#allocation2 + $0x28] sm:$0xff] %vm821, %v818
        %828 = vst.msk [vmem:[#allocation2 + $0x30] sm:$0xff] %vm821, %v819
        %829 = vst.msk [vmem:[#allocation2 + $0x38] sm:$0xff] %vm821, %v820
        %v830 = vld [vmem:[#allocation3] sm:$0xff]
        %v831 = vld [vmem:[#allocation3 + $0x8] sm:$0xff]
        %v832 = vld [vmem:[#allocation3 + $0x10] sm:$0xff]
        %v833 = vld [vmem:[#allocation3 + $0x18] sm:$0xff]
        %v834 = vld [vmem:[#allocation3 + $0x20] sm:$0xff]
        %v835 = vld [vmem:[#allocation3 + $0x28] sm:$0xff]
        %v836 = vld [vmem:[#allocation3 + $0x30] sm:$0xff]
        %v837 = vld [vmem:[#allocation3 + $0x38] sm:$0xff]
        %v838 = vsel %vm614, %v554, 0.0
        %v839 = vsel %vm615, %v555, 0.0
        %v840 = vsel %vm616, %v556, 0.0
        %v841 = vsel %vm617, %v557, 0.0
        %v842 = vsel %vm618, %v558, 0.0
        %v843 = vsel %vm619, %v559, 0.0
        %v844 = vsel %vm620, %v560, 0.0
        %v845 = vsel %vm621, %v561, 0.0
        %846 = vadd.xlane.f32.xlu0 %v838
        %v847 = vpop.xlane.xlu0 %846
        %848 = vadd.xlane.f32.xlu0 %v839
        %v849 = vpop.xlane.xlu0 %848
        %850 = vadd.xlane.f32.xlu0 %v840
        %v851 = vpop.xlane.xlu0 %850
        %852 = vadd.xlane.f32.xlu0 %v841
        %v853 = vpop.xlane.xlu0 %852
        %854 = vadd.xlane.f32.xlu0 %v842
        %v855 = vpop.xlane.xlu0 %854
        %856 = vadd.xlane.f32.xlu0 %v843
        %v857 = vpop.xlane.xlu0 %856
        %858 = vadd.xlane.f32.xlu0 %v844
        %v859 = vpop.xlane.xlu0 %858
        %860 = vadd.xlane.f32.xlu0 %v845
        %v861 = vpop.xlane.xlu0 %860
        %v862 = vadd.f32 %v830, %v847
        %v863 = vadd.f32 %v831, %v849
        %v864 = vadd.f32 %v832, %v851
        %v865 = vadd.f32 %v833, %v853
        %v866 = vadd.f32 %v834, %v855
        %v867 = vadd.f32 %v835, %v857
        %v868 = vadd.f32 %v836, %v859
        %v869 = vadd.f32 %v837, %v861
        %870 = vst.msk [vmem:[#allocation3] sm:$0xff] %vm821, %v862
        %871 = vst.msk [vmem:[#allocation3 + $0x8] sm:$0xff] %vm821, %v863
        %872 = vst.msk [vmem:[#allocation3 + $0x10] sm:$0xff] %vm821, %v864
        %873 = vst.msk [vmem:[#allocation3 + $0x18] sm:$0xff] %vm821, %v865
        %874 = vst.msk [vmem:[#allocation3 + $0x20] sm:$0xff] %vm821, %v866
        %875 = vst.msk [vmem:[#allocation3 + $0x28] sm:$0xff] %vm821, %v867
        %876 = vst.msk [vmem:[#allocation3 + $0x30] sm:$0xff] %vm821, %v868
        %877 = vst.msk [vmem:[#allocation3 + $0x38] sm:$0xff] %vm821, %v869
      $region52: #{tpu_custom_call.1} parent=39 // pred_fallthru
        _
      // Predicated region
      $region53: #{tpu_custom_call.1} parent=39 // pred_check
        %p878 = pneg %p325
      $region54: #{tpu_custom_call.1} parent=39 // pred_check_branch
        %880 = sbr.rel (%p878) target = $region56
      $region55: #{tpu_custom_call.1} parent=39 // pred_region
        %v881 = vld [vmem:[%s311] sm:$0xff]
        %v882 = vld [vmem:[%s311 + $0x8] sm:$0xff]
        %v883 = vld [vmem:[%s311 + $0x10] sm:$0xff]
        %v884 = vld [vmem:[%s311 + $0x18] sm:$0xff]
        %v885 = vld [vmem:[%s311 + $0x20] sm:$0xff]
        %v886 = vld [vmem:[%s311 + $0x28] sm:$0xff]
        %v887 = vld [vmem:[%s311 + $0x30] sm:$0xff]
        %v888 = vld [vmem:[%s311 + $0x38] sm:$0xff]
        %vm889 = vcmp.gt.f32.partialorder %v881, 0.0
        %vm890 = vcmp.gt.f32.partialorder %v882, 0.0
        %vm891 = vcmp.gt.f32.partialorder %v883, 0.0
        %vm892 = vcmp.gt.f32.partialorder %v884, 0.0
        %vm893 = vcmp.gt.f32.partialorder %v885, 0.0
        %vm894 = vcmp.gt.f32.partialorder %v886, 0.0
        %vm895 = vcmp.gt.f32.partialorder %v887, 0.0
        %vm896 = vcmp.gt.f32.partialorder %v888, 0.0
        %v897 = vld [vmem:[#allocation3] sm:$0xff]
        %v898 = vld [vmem:[#allocation3 + $0x8] sm:$0xff]
        %v899 = vld [vmem:[#allocation3 + $0x10] sm:$0xff]
        %v900 = vld [vmem:[#allocation3 + $0x18] sm:$0xff]
        %v901 = vld [vmem:[#allocation3 + $0x20] sm:$0xff]
        %v902 = vld [vmem:[#allocation3 + $0x28] sm:$0xff]
        %v903 = vld [vmem:[#allocation3 + $0x30] sm:$0xff]
        %v904 = vld [vmem:[#allocation3 + $0x38] sm:$0xff]
        %v905 = vld [vmem:[#allocation2] sm:$0xff]
        %v906 = vld [vmem:[#allocation2 + $0x8] sm:$0xff]
        %v907 = vld [vmem:[#allocation2 + $0x10] sm:$0xff]
        %v908 = vld [vmem:[#allocation2 + $0x18] sm:$0xff]
        %v909 = vld [vmem:[#allocation2 + $0x20] sm:$0xff]
        %v910 = vld [vmem:[#allocation2 + $0x28] sm:$0xff]
        %v911 = vld [vmem:[#allocation2 + $0x30] sm:$0xff]
        %v912 = vld [vmem:[#allocation2 + $0x38] sm:$0xff]
        %v913 = vlog2.pop %v905
        %v914 = vmul.f32 %v913, 0.6931472
        %v915 = vlog2.pop %v906
        %v916 = vmul.f32 %v915, 0.6931472
        %v917 = vlog2.pop %v907
        %v918 = vmul.f32 %v917, 0.6931472
        %v919 = vlog2.pop %v908
        %v920 = vmul.f32 %v919, 0.6931472
        %v921 = vlog2.pop %v909
        %v922 = vmul.f32 %v921, 0.6931472
        %v923 = vlog2.pop %v910
        %v924 = vmul.f32 %v923, 0.6931472
        %v925 = vlog2.pop %v911
        %v926 = vmul.f32 %v925, 0.6931472
        %v927 = vlog2.pop %v912
        %v928 = vmul.f32 %v927, 0.6931472
        %v929 = vmul.f32 %v914, %v881
        %v930 = vmul.f32 %v916, %v882
        %v931 = vmul.f32 %v918, %v883
        %v932 = vmul.f32 %v920, %v884
        %v933 = vmul.f32 %v922, %v885
        %v934 = vmul.f32 %v924, %v886
        %v935 = vmul.f32 %v926, %v887
        %v936 = vmul.f32 %v928, %v888
        %v937 = vsub.f32 %v897, %v929
        %v938 = vsub.f32 %v898, %v930
        %v939 = vsub.f32 %v899, %v931
        %v940 = vsub.f32 %v900, %v932
        %v941 = vsub.f32 %v901, %v933
        %v942 = vsub.f32 %v902, %v934
        %v943 = vsub.f32 %v903, %v935
        %v944 = vsub.f32 %v904, %v936
        %v945 = vsel %vm889, %v881, 1.0
        %v946 = vsel %vm890, %v882, 1.0
        %v947 = vsel %vm891, %v883, 1.0
        %v948 = vsel %vm892, %v884, 1.0
        %v949 = vsel %vm893, %v885, 1.0
        %v950 = vsel %vm894, %v886, 1.0
        %v951 = vsel %vm895, %v887, 1.0
        %v952 = vsel %vm896, %v888, 1.0
        %v953 = vrcp.pop %v945
        %v954 = vmul.f32 %v937, %v953
        %v955 = vrcp.pop %v946
        %v956 = vmul.f32 %v938, %v955
        %v957 = vrcp.pop %v947
        %v958 = vmul.f32 %v939, %v957
        %v959 = vrcp.pop %v948
        %v960 = vmul.f32 %v940, %v959
        %v961 = vrcp.pop %v949
        %v962 = vmul.f32 %v941, %v961
        %v963 = vrcp.pop %v950
        %v964 = vmul.f32 %v942, %v963
        %v965 = vrcp.pop %v951
        %v966 = vmul.f32 %v943, %v965
        %v967 = vrcp.pop %v952
        %v968 = vmul.f32 %v944, %v967
        %v969 = vsel %vm889, %v954, 0.0
        %v970 = vsel %vm890, %v956, 0.0
        %v971 = vsel %vm891, %v958, 0.0
        %v972 = vsel %vm892, %v960, 0.0
        %v973 = vsel %vm893, %v962, 0.0
        %v974 = vsel %vm894, %v964, 0.0
        %v975 = vsel %vm895, %v966, 0.0
        %v976 = vsel %vm896, %v968, 0.0
        %v977 = vsub.f32 0.0, %v969
        %v978 = vsub.f32 0.0, %v970
        %v979 = vsub.f32 0.0, %v971
        %v980 = vsub.f32 0.0, %v972
        %v981 = vsub.f32 0.0, %v973
        %v982 = vsub.f32 0.0, %v974
        %v983 = vsub.f32 0.0, %v975
        %v984 = vsub.f32 0.0, %v976
        %v985 = vmul.f32 %v977, 0.1
        %v986 = vmul.f32 %v978, 0.1
        %v987 = vmul.f32 %v979, 0.1
        %v988 = vmul.f32 %v980, 0.1
        %v989 = vmul.f32 %v981, 0.1
        %v990 = vmul.f32 %v982, 0.1
        %v991 = vmul.f32 %v983, 0.1
        %v992 = vmul.f32 %v984, 0.1
        %vm993 = vcmask 7168
        %994 = vst.msk [vmem:[%s317] sm:$0xff] %vm993, %v985
        %995 = vst.msk [vmem:[%s317 + $0x8] sm:$0xff] %vm993, %v986
        %996 = vst.msk [vmem:[%s317 + $0x10] sm:$0xff] %vm993, %v987
        %997 = vst.msk [vmem:[%s317 + $0x18] sm:$0xff] %vm993, %v988
        %998 = vst.msk [vmem:[%s317 + $0x20] sm:$0xff] %vm993, %v989
        %999 = vst.msk [vmem:[%s317 + $0x28] sm:$0xff] %vm993, %v990
        %1000 = vst.msk [vmem:[%s317 + $0x30] sm:$0xff] %vm993, %v991
        %1001 = vst.msk [vmem:[%s317 + $0x38] sm:$0xff] %vm993, %v992
        %v1002 = vsel %vm889, 1, 0
        %v1003 = vsel %vm890, 1, 0
        %v1004 = vsel %vm891, 1, 0
        %v1005 = vsel %vm892, 1, 0
        %v1006 = vsel %vm893, 1, 0
        %v1007 = vsel %vm894, 1, 0
        %v1008 = vsel %vm895, 1, 0
        %v1009 = vsel %vm896, 1, 0
        %v1010 = vcvt.s32.f32 %v1002
        %v1011 = vcvt.s32.f32 %v1003
        %v1012 = vcvt.s32.f32 %v1004
        %v1013 = vcvt.s32.f32 %v1005
        %v1014 = vcvt.s32.f32 %v1006
        %v1015 = vcvt.s32.f32 %v1007
        %v1016 = vcvt.s32.f32 %v1008
        %v1017 = vcvt.s32.f32 %v1009
        %1018 = vst.msk [vmem:[%s323] sm:$0xff] %vm993, %v1010
        %1019 = vst.msk [vmem:[%s323 + $0x8] sm:$0xff] %vm993, %v1011
        %1020 = vst.msk [vmem:[%s323 + $0x10] sm:$0xff] %vm993, %v1012
        %1021 = vst.msk [vmem:[%s323 + $0x18] sm:$0xff] %vm993, %v1013
        %1022 = vst.msk [vmem:[%s323 + $0x20] sm:$0xff] %vm993, %v1014
        %1023 = vst.msk [vmem:[%s323 + $0x28] sm:$0xff] %vm993, %v1015
        %1024 = vst.msk [vmem:[%s323 + $0x30] sm:$0xff] %vm993, %v1016
        %1025 = vst.msk [vmem:[%s323 + $0x38] sm:$0xff] %vm993, %v1017
      $region56: #{tpu_custom_call.1} parent=39 // pred_fallthru
        _
      %s1026 = smul.u32 8, %s22
      %p1027 = scmp.lt.s32.totalorder %s1026, 15
      %s1028 = scalar_select %p1027, %s1026, 15
      %s1029 = smul.addr %s1028, 8
      %s1030 = scalar_lea.vmem %s5, %s1029
      %s1031 = smul.u32 8, %s22
      %p1032 = scmp.lt.s32.totalorder %s1031, 15
      %s1033 = scalar_select %p1032, %s1031, 15
      %s1034 = smul.addr %s1033, 8
      %s1035 = scalar_lea.vmem %s6, %s1034
      // Predicated region
      $region57: #{tpu_custom_call.1} parent=39 // pred_check
        %p1036 = pneg %p168
      $region58: #{tpu_custom_call.1} parent=39 // pred_check_branch
        %1038 = sbr.rel (%p1036) target = $region60
      $region59: #{tpu_custom_call.1} parent=39 // pred_region
        %s1039 = smul.u32 8, %s22
      $region60: #{tpu_custom_call.1} parent=39 // pred_fallthru
        _
      // Predicated region
      $region61: #{tpu_custom_call.1} parent=39 // pred_check
        %p1040 = pneg %p194
      $region62: #{tpu_custom_call.1} parent=39 // pred_check_branch
        %1042 = sbr.rel (%p1040) target = $region64
      $region63: #{tpu_custom_call.1} parent=39 // pred_region
        %s1043 = smul.u32 8, %s22
      $region64: #{tpu_custom_call.1} parent=39 // pred_fallthru
        _
    $region40: #{tpu_custom_call.1} parent=5 // pred_fallthru
      _
    %p1044 = scmp.le.s32.totalorder 2, %s13
    // Predicated region
    $region65: #{tpu_custom_call.1} parent=5 // pred_check
      %p1045 = pneg %p1044
    $region66: #{tpu_custom_call.1} parent=5 // pred_check_branch
      %1047 = sbr.rel (%p1045) target = $region68
    $region67: #{tpu_custom_call.1} parent=5 // pred_region
      %s1048 = ssub.s32 %s13, 2
      // Predicated region
      $region69: #{tpu_custom_call.1} parent=67 // pred_check
        %p1049 = pneg %p174
      $region70: #{tpu_custom_call.1} parent=67 // pred_check_branch
        %1051 = sbr.rel (%p1049) target = $region72
      $region71: #{tpu_custom_call.1} parent=67 // pred_region
        %s1052 = smul.u32 8, %s24
        %p1053 = scmp.lt.s32.totalorder %s1052, 15
        %s1054 = scalar_select %p1053, %s1052, 15
        %s1055 = smul.addr %s1054, 8
        %s1056 = scalar_lea.vmem %s5, %s1055
      $region72: #{tpu_custom_call.1} parent=67 // pred_fallthru
        _
      // Predicated region
      $region73: #{tpu_custom_call.1} parent=67 // pred_check
        %p1057 = pneg %p200
      $region74: #{tpu_custom_call.1} parent=67 // pred_check_branch
        %1059 = sbr.rel (%p1057) target = $region76
      $region75: #{tpu_custom_call.1} parent=67 // pred_region
        %s1060 = smul.u32 8, %s24
        %p1061 = scmp.lt.s32.totalorder %s1060, 15
        %s1062 = scalar_select %p1061, %s1060, 15
        %s1063 = smul.addr %s1062, 8
        %s1064 = scalar_lea.vmem %s6, %s1063
      $region76: #{tpu_custom_call.1} parent=67 // pred_fallthru
        _
    $region68: #{tpu_custom_call.1} parent=5 // pred_fallthru
      _
  $region6: #{tpu_custom_call.1} parent=0 // loop_footer
    %s17 = sadd.s32 1, %s13
  $region7: #{tpu_custom_call.1} parent=0 // loop_footer_branch
    %12 = sbr.rel target = $region3
  $region8: #{tpu_custom_call.1} parent=0 // loop_exit
    _

</llo_original>
